<compile_context>
chip_gen: v7x
topology: tpu7x:2x2x1
jax: 0.10.0
libtpu: 0.0.40
codegen_flags: <defaults>
</compile_context>

<pallas_src>
import functools
import math

import jax
import jax.numpy as jnp
from jax import lax
from jax.experimental import pallas as pl
from jax.experimental.pallas import tpu as pltpu


def _cdiv(a, b):
    return -(-a // b)


def _round_up(x, m):
    return _cdiv(x, m) * m


def _choose_tile_rows(rows, lane):
    """Row-block size: ~4 MiB f32 per input per pipeline buffer, multiple of 32."""
    max_rows = max(32, (2048 * 512) // lane)
    if rows <= 32:
        return rows                      # single block whose dims equal the array dims
    t = min(max_rows, rows)
    if rows >= 64:
        # Guarantee >= 2 row-blocks so the 2-way split feeds both v7x TensorCores.
        t = min(t, _round_up(_cdiv(rows, 2), 32))
    t -= t % 32                          # multiple of 32: dtype-agnostic (f32 & bf16) tiling
    return max(t, 32)


def _dice_kernel(p_ref, t_ref, acc_ref, *, rows, tile_rows, lane, acc_rows,
                 steps_per_split, num_full_blocks, need_mask):
    """Accumulate lane-dense partial sums of p*t, p*p, t*t into the output block."""
    step = pl.program_id(1)

    @pl.when(step == 0)
    def _init():
        acc_ref[...] = jnp.zeros_like(acc_ref)

    p = p_ref[...].astype(jnp.float32)
    t = t_ref[...].astype(jnp.float32)

    def fold(x):
        # (tile_rows, lane) -> (acc_rows, lane): sublane-group split keeps the (8,128)
        # tiling intact, so the reduce is pure VPU vreg adds (no cross-lane work).
        return jnp.sum(x.reshape(-1, acc_rows, lane), axis=0)

    def accumulate(pv, tv):
        acc_ref[0, 0, :, :] += fold(pv * tv)
        acc_ref[0, 1, :, :] += fold(pv * pv)
        acc_ref[0, 2, :, :] += fold(tv * tv)

    if not need_mask:
        accumulate(p, t)
    else:
        block_idx = pl.program_id(0) * steps_per_split + step

        @pl.when(block_idx < num_full_blocks)
        def _full_block():                      # steady state: no masking cost
            accumulate(p, t)

        @pl.when(block_idx >= num_full_blocks)
        def _ragged_block():                    # partial / dummy tail blocks only
            row0 = block_idx * tile_rows
            rid = row0 + lax.broadcasted_iota(jnp.int32, (tile_rows, lane), 0)
            valid = rid < rows
            accumulate(jnp.where(valid, p, 0.0), jnp.where(valid, t, 0.0))


def dice_coefficient(prediction, target, eps=1e-6):
    """Dice coefficient over all elements of prediction/target (same shape)."""
    assert prediction.shape == target.shape, (prediction.shape, target.shape)
    n_elems = math.prod(prediction.shape)
    if n_elems == 0:
        return jnp.float32(0.0)

    # Lane-dense 2-D view without copying: largest lane width dividing the element count.
    lane = None
    for cand in (512, 256, 128):
        if n_elems % cand == 0:
            lane = cand
            break
    if lane is None:
        # TODO(synk): rare path (element count not a multiple of 128) still pads the
        # flattened inputs; could instead sum the tiny tail in plain JAX.
        lane = 512
    padded = _round_up(n_elems, lane)
    rows = padded // lane

    def to_2d(x):
        flat = jnp.ravel(x)
        if padded != n_elems:
            flat = jnp.pad(flat, (0, padded - n_elems))   # zeros contribute nothing
        return flat.reshape(rows, lane)

    p2d = to_2d(prediction)      # native dtype on the HBM->VMEM path (bf16 stays bf16)
    t2d = to_2d(target)

    tile_rows = _choose_tile_rows(rows, lane)
    acc_rows = 8 if tile_rows % 8 == 0 else tile_rows
    num_blocks = _cdiv(rows, tile_rows)
    n_splits = 2 if num_blocks >= 2 else 1            # leading "parallel" axis (v7x 2 TCs)
    steps_per_split = _cdiv(num_blocks, n_splits)
    need_mask = (n_splits * steps_per_split * tile_rows) != rows
    num_full_blocks = rows // tile_rows
    last_block = num_blocks - 1

    if need_mask:
        def in_index(s, i):
            # Clamp so every DMA stays in bounds; clamped/partial tiles are zero-masked.
            return (jnp.minimum(s * steps_per_split + i, last_block), 0)
    else:
        def in_index(s, i):
            return (s * steps_per_split + i, 0)

    in_spec = pl.BlockSpec((tile_rows, lane), in_index)
    out_spec = pl.BlockSpec((1, 3, acc_rows, lane), lambda s, i: (s, 0, 0, 0))

    kernel = functools.partial(
        _dice_kernel, rows=rows, tile_rows=tile_rows, lane=lane, acc_rows=acc_rows,
        steps_per_split=steps_per_split, num_full_blocks=num_full_blocks,
        need_mask=need_mask)

    bytes_in = n_elems * (p2d.dtype.itemsize + t2d.dtype.itemsize)
    out_bytes = n_splits * 3 * acc_rows * lane * 4

    partial = pl.pallas_call(
        kernel,
        out_shape=jax.ShapeDtypeStruct((n_splits, 3, acc_rows, lane), jnp.float32),
        grid_spec=pltpu.PrefetchScalarGridSpec(
            num_scalar_prefetch=0,
            grid=(n_splits, steps_per_split),
            in_specs=[in_spec, in_spec],
            out_specs=out_spec,
        ),
        compiler_params=pltpu.CompilerParams(
            dimension_semantics=("parallel", "arbitrary"),
            vmem_limit_bytes=32 * 1024 * 1024,
        ),
        cost_estimate=pl.CostEstimate(
            flops=6 * n_elems, transcendentals=0,
            bytes_accessed=bytes_in + out_bytes),
    )(p2d, t2d)

    # Tiny finalize on a few KB of lane-dense partial sums (plain JAX).
    sums = jnp.sum(partial, axis=(0, 2, 3))
    intersection = sums[0]
    denominator = jnp.maximum(sums[1] + sums[2], jnp.float32(eps))
    return 2.0 * intersection / denominator


if __name__ == "__main__":
    key = jax.random.PRNGKey(0)
    k1, k2, k3, k4 = jax.random.split(key, 4)

    def reference(p, t, eps=1e-6):
        p = p.astype(jnp.float32)
        t = t.astype(jnp.float32)
        inter = jnp.sum(p * t)
        denom = jnp.sum(p * p) + jnp.sum(t * t)
        return 2.0 * inter / jnp.maximum(denom, jnp.float32(eps))

    # Small shape consistent with the module's (B, C, H, W) segmentation use.
    B, C, H, W = 2, 1, 16, 16
    pred = jax.nn.sigmoid(jax.random.normal(k1, (B, C, H, W), dtype=jnp.float32))
    targ = (jax.random.uniform(k2, (B, C, H, W)) > 0.5).astype(jnp.float32)
    out = dice_coefficient(pred, targ)
    jax.block_until_ready(out)
    ref = reference(pred, targ)
    assert jnp.allclose(out, ref, rtol=1e-5, atol=1e-6), (out, ref)

    # Multi-block grid: exercises the 2-way split and the ragged last block path.
    pred2 = jax.nn.sigmoid(jax.random.normal(k3, (2, 3, 40, 40), dtype=jnp.float32))
    targ2 = (jax.random.uniform(k4, (2, 3, 40, 40)) > 0.5).astype(jnp.float32)
    out2 = dice_coefficient(pred2, targ2)
    jax.block_until_ready(out2)
    ref2 = reference(pred2, targ2)
    assert jnp.allclose(out2, ref2, rtol=1e-5, atol=1e-6), (out2, ref2)

    # bf16 inputs: transferred HBM->VMEM in bf16, upcast to f32 inside the kernel.
    out_bf16 = dice_coefficient(pred2.astype(jnp.bfloat16), targ2.astype(jnp.bfloat16))
    jax.block_until_ready(out_bf16)
    assert jnp.allclose(out_bf16, ref2, rtol=2e-2, atol=2e-2), (out_bf16, ref2)

    # Element count that is not a multiple of 128 (pad-fallback path).
    pred3 = jax.nn.sigmoid(jax.random.normal(k1, (3, 5, 7, 11), dtype=jnp.float32))
    targ3 = (jax.random.uniform(k2, (3, 5, 7, 11)) > 0.5).astype(jnp.float32)
    out3 = dice_coefficient(pred3, targ3)
    jax.block_until_ready(out3)
    ref3 = reference(pred3, targ3)
    assert jnp.allclose(out3, ref3, rtol=1e-5, atol=1e-6), (out3, ref3)

    print("KERNEL_OK")
</pallas_src>

<mosaic_0001>
module attributes {stable_mosaic.version = 11 : i64} {
  func.func @_dice_kernel(%arg0: i32, %arg1: i32, %arg2: memref<1x512xf32, #tpu.memory_space<vmem>>, %arg3: memref<1x512xf32, #tpu.memory_space<vmem>>, %arg4: memref<1x3x1x512xf32, #tpu.memory_space<vmem>>) attributes {dimension_semantics = [#tpu.dimension_semantics<parallel>, #tpu.dimension_semantics<arbitrary>], iteration_bounds = array<i64: 1, 1>, scalar_prefetch = 0 : i64, scratch_operands = 0 : i64, tpu.core_type = #tpu.core_type<tc>, window_params = [{transform_indices = @transform_0, window_bounds = array<i64: 1, 512>}, {transform_indices = @transform_1, window_bounds = array<i64: 1, 512>}, {transform_indices = @transform_2, window_bounds = array<i64: 1, 3, 1, 512>}]} {
    %c0_i32 = arith.constant 0 : i32
    %0 = arith.cmpi eq, %arg1, %c0_i32 : i32
    %1 = arith.extui %0 : i1 to i32
    %c0_i32_0 = arith.constant 0 : i32
    %2 = arith.cmpi ne, %1, %c0_i32_0 : i32
    scf.if %2 {
      %cst_28 = arith.constant 0.000000e+00 : f32
      %32 = vector.broadcast %cst_28 : f32 to vector<1x3x1x512xf32>
      %c0_29 = arith.constant 0 : index
      %c0_30 = arith.constant 0 : index
      %c0_31 = arith.constant 0 : index
      %c0_32 = arith.constant 0 : index
      %33 = vector.load %arg4[%c0_29, %c0_30, %c0_31, %c0_32] : memref<1x3x1x512xf32, #tpu.memory_space<vmem>>, vector<1x3x1x512xf32>
      tpu.vector_store %arg4[%c0_29, %c0_30, %c0_31, %c0_32], %32 {strides = array<i32>} : memref<1x3x1x512xf32, #tpu.memory_space<vmem>>, vector<1x3x1x512xf32>,
    } else {
    }
    %c0 = arith.constant 0 : index
    %c0_1 = arith.constant 0 : index
    %3 = vector.load %arg2[%c0, %c0_1] : memref<1x512xf32, #tpu.memory_space<vmem>>, vector<1x512xf32>
    %c0_2 = arith.constant 0 : index
    %c0_3 = arith.constant 0 : index
    %4 = vector.load %arg3[%c0_2, %c0_3] : memref<1x512xf32, #tpu.memory_space<vmem>>, vector<1x512xf32>
    %c0_4 = arith.constant 0 : index
    %c0_5 = arith.constant 0 : index
    %c0_6 = arith.constant 0 : index
    %c0_7 = arith.constant 0 : index
    %5 = vector.load %arg4[%c0_4, %c0_5, %c0_6, %c0_7] : memref<1x3x1x512xf32, #tpu.memory_space<vmem>>, vector<1x1x1x512xf32>
    %6 = vector.shape_cast %5 : vector<1x1x1x512xf32> to vector<1x512xf32>
    %7 = arith.mulf %3, %4 : vector<1x512xf32>
    %8 = vector.shape_cast %7 : vector<1x512xf32> to vector<1x1x512xf32>
    %cst = arith.constant dense<0.000000e+00> : vector<1x512xf32>
    %9 = vector.multi_reduction <add>, %8, %cst [0] : vector<1x1x512xf32> to vector<1x512xf32>
    %10 = arith.addf %6, %9 : vector<1x512xf32>
    %c0_8 = arith.constant 0 : index
    %c0_9 = arith.constant 0 : index
    %c0_10 = arith.constant 0 : index
    %c0_11 = arith.constant 0 : index
    %11 = vector.load %arg4[%c0_8, %c0_9, %c0_10, %c0_11] : memref<1x3x1x512xf32, #tpu.memory_space<vmem>>, vector<1x1x1x512xf32>
    %12 = vector.shape_cast %11 : vector<1x1x1x512xf32> to vector<1x512xf32>
    %13 = vector.shape_cast %10 : vector<1x512xf32> to vector<1x1x1x512xf32>
    tpu.vector_store %arg4[%c0_8, %c0_9, %c0_10, %c0_11], %13 {strides = array<i32>} : memref<1x3x1x512xf32, #tpu.memory_space<vmem>>, vector<1x1x1x512xf32>,
    %c0_12 = arith.constant 0 : index
    %c1 = arith.constant 1 : index
    %c0_13 = arith.constant 0 : index
    %c0_14 = arith.constant 0 : index
    %14 = vector.load %arg4[%c0_12, %c1, %c0_13, %c0_14] : memref<1x3x1x512xf32, #tpu.memory_space<vmem>>, vector<1x1x1x512xf32>
    %15 = vector.shape_cast %14 : vector<1x1x1x512xf32> to vector<1x512xf32>
    %16 = arith.mulf %3, %3 : vector<1x512xf32>
    %17 = vector.shape_cast %16 : vector<1x512xf32> to vector<1x1x512xf32>
    %cst_15 = arith.constant dense<0.000000e+00> : vector<1x512xf32>
    %18 = vector.multi_reduction <add>, %17, %cst_15 [0] : vector<1x1x512xf32> to vector<1x512xf32>
    %19 = arith.addf %15, %18 : vector<1x512xf32>
    %c0_16 = arith.constant 0 : index
    %c1_17 = arith.constant 1 : index
    %c0_18 = arith.constant 0 : index
    %c0_19 = arith.constant 0 : index
    %20 = vector.load %arg4[%c0_16, %c1_17, %c0_18, %c0_19] : memref<1x3x1x512xf32, #tpu.memory_space<vmem>>, vector<1x1x1x512xf32>
    %21 = vector.shape_cast %20 : vector<1x1x1x512xf32> to vector<1x512xf32>
    %22 = vector.shape_cast %19 : vector<1x512xf32> to vector<1x1x1x512xf32>
    tpu.vector_store %arg4[%c0_16, %c1_17, %c0_18, %c0_19], %22 {strides = array<i32>} : memref<1x3x1x512xf32, #tpu.memory_space<vmem>>, vector<1x1x1x512xf32>,
    %c0_20 = arith.constant 0 : index
    %c2 = arith.constant 2 : index
    %c0_21 = arith.constant 0 : index
    %c0_22 = arith.constant 0 : index
    %23 = vector.load %arg4[%c0_20, %c2, %c0_21, %c0_22] : memref<1x3x1x512xf32, #tpu.memory_space<vmem>>, vector<1x1x1x512xf32>
    %24 = vector.shape_cast %23 : vector<1x1x1x512xf32> to vector<1x512xf32>
    %25 = arith.mulf %4, %4 : vector<1x512xf32>
    %26 = vector.shape_cast %25 : vector<1x512xf32> to vector<1x1x512xf32>
    %cst_23 = arith.constant dense<0.000000e+00> : vector<1x512xf32>
    %27 = vector.multi_reduction <add>, %26, %cst_23 [0] : vector<1x1x512xf32> to vector<1x512xf32>
    %28 = arith.addf %24, %27 : vector<1x512xf32>
    %c0_24 = arith.constant 0 : index
    %c2_25 = arith.constant 2 : index
    %c0_26 = arith.constant 0 : index
    %c0_27 = arith.constant 0 : index
    %29 = vector.load %arg4[%c0_24, %c2_25, %c0_26, %c0_27] : memref<1x3x1x512xf32, #tpu.memory_space<vmem>>, vector<1x1x1x512xf32>
    %30 = vector.shape_cast %29 : vector<1x1x1x512xf32> to vector<1x512xf32>
    %31 = vector.shape_cast %28 : vector<1x512xf32> to vector<1x1x1x512xf32>
    tpu.vector_store %arg4[%c0_24, %c2_25, %c0_26, %c0_27], %31 {strides = array<i32>} : memref<1x3x1x512xf32, #tpu.memory_space<vmem>>, vector<1x1x1x512xf32>,
    return
  }
  func.func @transform_0(%arg0: i32, %arg1: i32) -> (i32, i32) {
    %c1_i32 = arith.constant 1 : i32
    %0 = arith.muli %arg0, %c1_i32 : i32
    %1 = arith.addi %0, %arg1 : i32
    %c0_i32 = arith.constant 0 : i32
    %c0_i32_0 = arith.constant 0 : i32
    return %1, %c0_i32 : i32, i32
  }
  func.func @transform_1(%arg0: i32, %arg1: i32) -> (i32, i32) {
    %c1_i32 = arith.constant 1 : i32
    %0 = arith.muli %arg0, %c1_i32 : i32
    %1 = arith.addi %0, %arg1 : i32
    %c0_i32 = arith.constant 0 : i32
    %c0_i32_0 = arith.constant 0 : i32
    return %1, %c0_i32 : i32, i32
  }
  func.func @transform_2(%arg0: i32, %arg1: i32) -> (i32, i32, i32, i32) {
    %c0_i32 = arith.constant 0 : i32
    %c0_i32_0 = arith.constant 0 : i32
    %c0_i32_1 = arith.constant 0 : i32
    %c0_i32_2 = arith.constant 0 : i32
    return %arg0, %c0_i32, %c0_i32_0, %c0_i32_1 : i32, i32, i32, i32
  }
}

</mosaic_0001>

<llo_original>
// kernel: tpu_custom_call.1
$region0: #{tpu_custom_call.1}
  #allocation0 [shape = 'u32[]', space=smem, size = 0x4, offset = 0x4, fixed_abs, tag = 'smem constant byte address 0x4 - core index']
  #allocation1 [shape = 'u32[144,128]{1,0:T(1,128)}', space=vmem, size = 0x12000, scoped, tag = 'internal scratch']
  %s0 = inlined_call_operand.hbm [shape: f32[1,512], index: 0, kind: input, shape index: {}]
  %s1 = inlined_call_operand.hbm [shape: f32[1,512], index: 1, kind: input, shape index: {}]
  %s2 = inlined_call_operand.hbm [shape: f32[1,3,1,512], index: 2, kind: output, shape index: {}]
  %s3 = sld [smem:[#allocation0]]
  $region30: #{tpu_custom_call.1} parent=0
    _
  %s5 = ssub.s32 1, %s3
  %s6 = scalar_select 0, %s5, %s3
  $region1: #{tpu_custom_call.1} parent=0
    #allocation2 [shape = 'u8[2048]{0}', space=vmem, size = 0x800, scoped, tag = 'input window, operand 0, single buffered']
    #allocation3 [shape = 's32[1]{0}', space=sflag, size = 0x4, scoped, tag = 'scoped memory for tpu_custom_call.1']
    #allocation4 [shape = 's32[1]{0}', space=sflag, size = 0x4, scoped, tag = 'scoped memory for tpu_custom_call.1']
    #allocation5 [shape = 'u8[2048]{0}', space=vmem, size = 0x800, scoped, tag = 'input window, operand 1, single buffered']
    #allocation6 [shape = 's32[1]{0}', space=sflag, size = 0x4, scoped, tag = 'scoped memory for tpu_custom_call.1']
    #allocation7 [shape = 'u8[6144]{0}', space=vmem, size = 0x1800, scoped, tag = 'output window, operand 0, single buffered']
    %7 = vsyncpa [#allocation3], 0
    %8 = vsyncpa [#allocation6], 0
    %9 = vsyncpa [#allocation4], 0
    // Predicated region
    $region2: #{tpu_custom_call.1} parent=1 // pred_check
      _
    $region3: #{tpu_custom_call.1} parent=1 // pred_check_branch
      %11 = sbr.rel (0) target = $region5
    $region4: #{tpu_custom_call.1} parent=1 // pred_region
      %s12 = sadd.s32 0, 0
      %s14 = ssub.s32 64, 64
      %15 = vsyncadd [#allocation3], %s14
      %s16 = smul.addr %s12, 4
      %s17 = smul.addr %s16, 16
      %s18 = scalar_lea.hbm %s0, %s17
      %s20 = sshll.u32 [#allocation2], 4
      %s21 = int_to_ptr.vmem [resolvable:$true] %s20
      %23 = dma.hbm_to_vmem [thread:$0]  %s18, 64, %s21, [#allocation3]
    $region5: #{tpu_custom_call.1} parent=1 // pred_fallthru
      _
    // Predicated region
    $region6: #{tpu_custom_call.1} parent=1 // pred_check
      _
    $region7: #{tpu_custom_call.1} parent=1 // pred_check_branch
      %25 = sbr.rel (0) target = $region9
    $region8: #{tpu_custom_call.1} parent=1 // pred_region
      %s26 = sadd.s32 0, 0
      %s28 = ssub.s32 64, 64
      %29 = vsyncadd [#allocation6], %s28
      %s30 = smul.addr %s26, 4
      %s31 = smul.addr %s30, 16
      %s32 = scalar_lea.hbm %s1, %s31
      %s34 = sshll.u32 [#allocation5], 4
      %s35 = int_to_ptr.vmem [resolvable:$true] %s34
      %37 = dma.hbm_to_vmem [thread:$0]  %s32, 64, %s35, [#allocation6]
    $region9: #{tpu_custom_call.1} parent=1 // pred_fallthru
      _
    // Predicated region
    $region10: #{tpu_custom_call.1} parent=1 // pred_check
      _
    $region11: #{tpu_custom_call.1} parent=1 // pred_check_branch
      %39 = sbr.rel (0) target = $region13
    $region12: #{tpu_custom_call.1} parent=1 // pred_region
      %40 = dma.done [#allocation3], 64
    $region13: #{tpu_custom_call.1} parent=1 // pred_fallthru
      _
    // Predicated region
    $region14: #{tpu_custom_call.1} parent=1 // pred_check
      _
    $region15: #{tpu_custom_call.1} parent=1 // pred_check_branch
      %42 = sbr.rel (0) target = $region17
    $region16: #{tpu_custom_call.1} parent=1 // pred_region
      %43 = dma.done [#allocation6], 64
    $region17: #{tpu_custom_call.1} parent=1 // pred_fallthru
      _
    %s44 = sadd.s32 0, 0
    %s45 = sadd.s32 0, 0
    %p46 = scmp.eq.s32.totalorder 0, 0
    // Predicated region
    $region18: #{tpu_custom_call.1} parent=1 // pred_check
      %p47 = pneg %p46
    $region19: #{tpu_custom_call.1} parent=1 // pred_check_branch
      %49 = sbr.rel (%p47) target = $region21
    $region20: #{tpu_custom_call.1} parent=1 // pred_region
      %v50 = vlaneseq
      %vm51 = vcmp.ge.s32.totalorder %v50, 0
      %vm52 = vcmp.lt.s32.totalorder %v50, 512
      %vm53 = vmand %vm51, %vm52
      %54 = vst.msk [vmem:[#allocation7] sm:$0xf] %vm53, 0.0
      %55 = vst.msk [vmem:[#allocation7 + $0x4] sm:$0xf] %vm53, 0.0
      %56 = vst.msk [vmem:[#allocation7 + $0x8] sm:$0xf] %vm53, 0.0
    $region21: #{tpu_custom_call.1} parent=1 // pred_fallthru
      _
    %v57 = vld [vmem:[#allocation2] sm:$0xf]
    %v58 = vld [vmem:[#allocation5] sm:$0xf]
    %v59 = vld [vmem:[#allocation7] sm:$0xf]
    %v60 = vmul.f32 %v57, %v58
    %v61 = vadd.f32 %v60, 0.0
    %v62 = vadd.f32 %v59, %v61
    %v63 = vlaneseq
    %vm64 = vcmp.ge.s32.totalorder %v63, 0
    %vm65 = vcmp.lt.s32.totalorder %v63, 512
    %vm66 = vmand %vm64, %vm65
    %67 = vst.msk [vmem:[#allocation7] sm:$0xf] %vm66, %v62
    %s68 = scalar_lea.vmem [#allocation7], 4
    %v69 = vld [vmem:[%s68] sm:$0xf]
    %v70 = vmul.f32 %v57, %v57
    %v71 = vadd.f32 %v70, 0.0
    %v72 = vadd.f32 %v69, %v71
    %73 = vst.msk [vmem:[%s68] sm:$0xf] %vm66, %v72
    %s74 = scalar_lea.vmem [#allocation7], 8
    %v75 = vld [vmem:[%s74] sm:$0xf]
    %v76 = vmul.f32 %v58, %v58
    %v77 = vadd.f32 %v76, 0.0
    %v78 = vadd.f32 %v75, %v77
    %79 = vst.msk [vmem:[%s74] sm:$0xf] %vm66, %v78
    // Predicated region
    $region22: #{tpu_custom_call.1} parent=1 // pred_check
      _
    $region23: #{tpu_custom_call.1} parent=1 // pred_check_branch
      %81 = sbr.rel (0) target = $region25
    $region24: #{tpu_custom_call.1} parent=1 // pred_region
      %s83 = ssub.s32 192, 192
      %84 = vsyncadd [#allocation4], %s83
      %s85 = sshll.u32 [#allocation7], 4
      %s86 = int_to_ptr.vmem [resolvable:$true] %s85
      %91 = dma.vmem_to_hbm [thread:$0]  %s86, 192, %s2, [#allocation4], 64, 64, 4
    $region25: #{tpu_custom_call.1} parent=1 // pred_fallthru
      _
    // Predicated region
    $region26: #{tpu_custom_call.1} parent=1 // pred_check
      _
    $region27: #{tpu_custom_call.1} parent=1 // pred_check_branch
      %93 = sbr.rel (0) target = $region29
    $region28: #{tpu_custom_call.1} parent=1 // pred_region
      %94 = dma.done [#allocation4], 192
    $region29: #{tpu_custom_call.1} parent=1 // pred_fallthru
      _
    %95 = vsyncpa [#allocation3], 1
    %96 = vsyncpa [#allocation6], 1
    %97 = vsyncpa [#allocation4], 1

</llo_original>
